<compile_context>
chip_gen: v5e
topology: v5e:2x2
jax: 0.10.0
libtpu: 0.0.40
codegen_flags: <defaults>
</compile_context>

<pallas_src>
import jax
import jax.numpy as jnp
from jax.experimental import pallas as pl
from jax.experimental.pallas import tpu as pltpu

_LANE = 128
_MAX_TN = 32768   # lanes per grid step (f32): ~0.4 MiB of DMA/step >> 0.35 us step cost
_MIN_TN = 1024    # below 2*_MIN_TN a single grid step beats splitting


def _linear_sigmoid_kernel(w_ref, b_ref, x_ref, o_ref):
    # w_ref: SMEM (f_out, f_in) f32  -- scalar reads -> free sreg splat on VPU
    # b_ref: SMEM (f_out,)      f32
    # x_ref: VMEM (f_in, tn)    f32  -- batch on lanes (dense vregs)
    # o_ref: VMEM (f_out, tn)   f32  -- lane-dense, no padded columns
    f_in = x_ref.shape[0]
    f_out = o_ref.shape[0]
    x = x_ref[...]
    for o in range(f_out):            # static unroll (f_out = 1 here)
        acc = x[0:1, :] * w_ref[o, 0]
        for k in range(1, f_in):      # static unroll (f_in = 2 here)
            acc = acc + x[k:k + 1, :] * w_ref[o, k]
        o_ref[o:o + 1, :] = jax.nn.sigmoid(acc + b_ref[o])


def prepare_params(w, b):
    """One-time parameter prep, hoisted out of the per-call path.

    With batch-on-lanes + SMEM scalars there is nothing to transpose or pad;
    just cast to f32 once and cache.
    """
    return w.astype(jnp.float32), b.astype(jnp.float32)


@jax.jit
def basic_model_forward(x, w, b):
    """sigmoid(x @ w.T + b); w: (f_out, f_in), b: (f_out,); returns (N, f_out)."""
    n, f_in = x.shape
    f_out = w.shape[0]

    # Lane-axis tiling of the batch.
    n128 = pl.cdiv(n, _LANE) * _LANE
    if n128 <= 2 * _MIN_TN:
        num_blocks = 1
    else:
        num_blocks = max(2, pl.cdiv(n128, _MAX_TN))   # >=2: both v7x TCs get work
    tn = pl.cdiv(n128, num_blocks * _LANE) * _LANE    # near-even split, aligned
    n_pad = tn * num_blocks

    # Mirror `x.to(torch.float32)`, put batch on lanes, pad to the grid.
    # All of this fuses under jit instead of running as separate dispatches.
    xt = jnp.pad(x.astype(jnp.float32).T, ((0, 0), (0, n_pad - n)))

    # TODO(synk): if f_in/f_out ever grow past a few units, switch to an MXU
    # path with a k grid axis + f32 accumulator scratch, budgeting the
    # double-buffered tiles against v7x's 64 MiB VMEM (32 MiB scoped default),
    # not the 128 MiB of v5e/v6e.
    out = pl.pallas_call(
        _linear_sigmoid_kernel,
        out_shape=jax.ShapeDtypeStruct((f_out, n_pad), jnp.float32),
        grid=(num_blocks,),
        in_specs=[
            pl.BlockSpec(memory_space=pltpu.MemorySpace.SMEM),   # w -> SMEM scalars
            pl.BlockSpec(memory_space=pltpu.MemorySpace.SMEM),   # b -> SMEM scalars
            pl.BlockSpec((f_in, tn), lambda i: (0, i)),          # x, batch on lanes
        ],
        out_specs=pl.BlockSpec((f_out, tn), lambda i: (0, i)),
        compiler_params=pltpu.CompilerParams(
            # Batch axis is independent -> Mosaic may shard it across the two
            # TensorCores on v7x; harmless (single TC) on v5e/v6e.
            dimension_semantics=("parallel",),
        ),
    )(w.astype(jnp.float32), b.astype(jnp.float32), xt)

    # Drop lane padding and return (N, f_out) like nn.Linear.
    return out[:, :n].T


if __name__ == "__main__":
    key = jax.random.PRNGKey(0)
    kx, kw, kb, kx2 = jax.random.split(key, 4)

    batch, in_features, out_features = 8, 2, 1

    # Deterministic params matching nn.Linear(2, 1) init bounds.
    bound = 1.0 / (in_features ** 0.5)
    w = jax.random.uniform(kw, (out_features, in_features), jnp.float32, -bound, bound)
    b = jax.random.uniform(kb, (out_features,), jnp.float32, -bound, bound)
    w32, b32 = prepare_params(w, b)   # hoisted one-time param prep

    x = jax.random.normal(kx, (batch, in_features), jnp.float32)
    out = basic_model_forward(x, w32, b32)
    jax.block_until_ready(out)

    ref = jax.nn.sigmoid(x @ w.T + b)
    assert out.shape == (batch, out_features)
    assert jnp.allclose(out, ref, atol=1e-5), "mismatch vs reference (small batch)"

    # Also exercise the multi-block / padded-tail path.
    n2 = 4500
    x2 = jax.random.normal(kx2, (n2, in_features), jnp.float32)
    out2 = basic_model_forward(x2, w32, b32)
    jax.block_until_ready(out2)
    ref2 = jax.nn.sigmoid(x2 @ w.T + b)
    assert out2.shape == (n2, out_features)
    assert jnp.allclose(out2, ref2, atol=1e-5), "mismatch vs reference (multi-block)"

    print("KERNEL_OK")
</pallas_src>

<mosaic_0001>
module attributes {stable_mosaic.version = 11 : i64} {
  func.func @_linear_sigmoid_kernel(%arg0: i32, %arg1: memref<1x2xf32, #tpu.memory_space<smem>>, %arg2: memref<1xf32, #tpu.memory_space<smem>>, %arg3: memref<2x128xf32, #tpu.memory_space<vmem>>, %arg4: memref<1x128xf32, #tpu.memory_space<vmem>>) attributes {dimension_semantics = [#tpu.dimension_semantics<parallel>], iteration_bounds = array<i64: 1>, scalar_prefetch = 0 : i64, scratch_operands = 0 : i64, tpu.core_type = #tpu.core_type<tc>, window_params = [{transform_indices = @transform_0, window_bounds = array<i64: 1, 2>}, {transform_indices = @transform_1, window_bounds = array<i64: 1>}, {transform_indices = @transform_2, window_bounds = array<i64: 2, 128>}, {transform_indices = @transform_3, window_bounds = array<i64: 1, 128>}]} {
    %c0 = arith.constant 0 : index
    %c0_0 = arith.constant 0 : index
    %0 = vector.load %arg3[%c0, %c0_0] : memref<2x128xf32, #tpu.memory_space<vmem>>, vector<2x128xf32>
    %1 = vector.extract_strided_slice %0 {offsets = [0, 0], sizes = [1, 128], strides = [1, 1]} : vector<2x128xf32> to vector<1x128xf32>
    %c0_1 = arith.constant 0 : index
    %c0_2 = arith.constant 0 : index
    %2 = memref.load %arg1[%c0_1, %c0_2] : memref<1x2xf32, #tpu.memory_space<smem>>
    %3 = vector.broadcast %2 : f32 to vector<1x128xf32>
    %4 = arith.mulf %1, %3 : vector<1x128xf32>
    %5 = vector.extract_strided_slice %0 {offsets = [1, 0], sizes = [1, 128], strides = [1, 1]} : vector<2x128xf32> to vector<1x128xf32>
    %c0_3 = arith.constant 0 : index
    %c1 = arith.constant 1 : index
    %6 = memref.load %arg1[%c0_3, %c1] : memref<1x2xf32, #tpu.memory_space<smem>>
    %7 = vector.broadcast %6 : f32 to vector<1x128xf32>
    %8 = arith.mulf %5, %7 : vector<1x128xf32>
    %9 = arith.addf %4, %8 : vector<1x128xf32>
    %c0_4 = arith.constant 0 : index
    %10 = memref.load %arg2[%c0_4] : memref<1xf32, #tpu.memory_space<smem>>
    %11 = vector.broadcast %10 : f32 to vector<1x128xf32>
    %12 = arith.addf %9, %11 : vector<1x128xf32>
    %13 = arith.negf %12 : vector<1x128xf32>
    %14 = math.exp %13 : vector<1x128xf32>
    %cst = arith.constant 1.000000e+00 : f32
    %15 = vector.broadcast %cst : f32 to vector<1x128xf32>
    %16 = arith.addf %15, %14 : vector<1x128xf32>
    %17 = arith.divf %15, %16 : vector<1x128xf32>
    %c0_5 = arith.constant 0 : index
    %c0_6 = arith.constant 0 : index
    %18 = vector.load %arg4[%c0_5, %c0_6] : memref<1x128xf32, #tpu.memory_space<vmem>>, vector<1x128xf32>
    tpu.vector_store %arg4[%c0_5, %c0_6], %17 {strides = array<i32>} : memref<1x128xf32, #tpu.memory_space<vmem>>, vector<1x128xf32>,
    return
  }
  func.func @transform_0(%arg0: i32) -> (i32, i32) {
    %c0_i32 = arith.constant 0 : i32
    %c0_i32_0 = arith.constant 0 : i32
    %c0_i32_1 = arith.constant 0 : i32
    return %c0_i32, %c0_i32_0 : i32, i32
  }
  func.func @transform_1(%arg0: i32) -> i32 {
    %c0_i32 = arith.constant 0 : i32
    %c0_i32_0 = arith.constant 0 : i32
    return %c0_i32 : i32
  }
  func.func @transform_2(%arg0: i32) -> (i32, i32) {
    %c0_i32 = arith.constant 0 : i32
    %c0_i32_0 = arith.constant 0 : i32
    return %c0_i32, %arg0 : i32, i32
  }
  func.func @transform_3(%arg0: i32) -> (i32, i32) {
    %c0_i32 = arith.constant 0 : i32
    %c0_i32_0 = arith.constant 0 : i32
    return %c0_i32, %arg0 : i32, i32
  }
}

</mosaic_0001>

<llo_original>
// kernel: basic_model_forward.1
$region0: #{basic_model_forward.1}
  #allocation0 [shape = 'u32[]', space=smem, size = 0x4, offset = 0x4, fixed_abs, tag = 'smem constant byte address 0x4 - core index']
  #allocation1 [shape = 'u32[72,128]{1,0:T(1,128)}', space=vmem, size = 0x9000, scoped, tag = 'internal scratch']
  #allocation2 [shape = 'f32[1]{0:T(128)S(6)}', space=smem, size = 0x200, scoped, tag = 'scoped memory for basic_model_forward.1']
  %s0 = inlined_call_operand.vmem [shape: f32[1,2], index: 0, kind: input, shape index: {}]
  %s1 = inlined_call_operand.<no memory space> [shape: f32[1], index: 1, kind: input, shape index: {}]
  %s2 = inlined_call_operand.vmem [shape: f32[2,128], index: 2, kind: input, shape index: {}]
  %s3 = inlined_call_operand.vmem [shape: f32[1,128], index: 3, kind: output, shape index: {}]
  %s4 = sld [smem:[#allocation0]]
  $region26: #{basic_model_forward.1} parent=0
    _
  %s6 = ssub.s32 1, %s4
  %s7 = scalar_select 0, %s6, %s4
  %8 = sst [smem:[#allocation2]] %s1
  $region1: #{basic_model_forward.1} parent=0
    #allocation3 [shape = 'u8[512]{0}', space=smem, size = 0x200, scoped, tag = 'input window, operand 0, single buffered']
    #allocation4 [shape = 's32[1]{0}', space=sflag, size = 0x4, scoped, tag = 'scoped memory for basic_model_forward.1']
    %9 = vsyncpa [#allocation4], 0
    // Predicated region
    $region2: #{basic_model_forward.1} parent=1 // pred_check
      _
    $region3: #{basic_model_forward.1} parent=1 // pred_check_branch
      %11 = sbr.rel (0) target = $region5
    $region4: #{basic_model_forward.1} parent=1 // pred_region
      %13 = vsyncadd [#allocation4], 0
      %s15 = sshll.u32 %s0, 4
      %s16 = int_to_ptr.vmem [resolvable:$true] %s15
      %18 = dma.vmem_to_smem %s16, 16, [#allocation3], [#allocation4]
    $region5: #{basic_model_forward.1} parent=1 // pred_fallthru
      _
    // Predicated region
    $region6: #{basic_model_forward.1} parent=1 // pred_check
      _
    $region7: #{basic_model_forward.1} parent=1 // pred_check_branch
      %20 = sbr.rel (0) target = $region9
    $region8: #{basic_model_forward.1} parent=1 // pred_region
      _
    $region9: #{basic_model_forward.1} parent=1 // pred_fallthru
      _
    // Predicated region
    $region10: #{basic_model_forward.1} parent=1 // pred_check
      _
    $region11: #{basic_model_forward.1} parent=1 // pred_check_branch
      %22 = sbr.rel (0) target = $region13
    $region12: #{basic_model_forward.1} parent=1 // pred_region
      _
    $region13: #{basic_model_forward.1} parent=1 // pred_fallthru
      _
    // Predicated region
    $region14: #{basic_model_forward.1} parent=1 // pred_check
      _
    $region15: #{basic_model_forward.1} parent=1 // pred_check_branch
      %24 = sbr.rel (0) target = $region17
    $region16: #{basic_model_forward.1} parent=1 // pred_region
      %26 = dma.done [#allocation4], 16
    $region17: #{basic_model_forward.1} parent=1 // pred_fallthru
      _
    %27 = sfence
    %v28 = vld [vmem:[%s2] sm:$0x3]
    %s29 = sld [smem:[#allocation3]]
    %v30 = vstv %s29
    %v31 = vmul.f32 %v28, %v30
    %s32 = sld [smem:[#allocation3 + $0x1]]
    %v33 = vstv %s32
    %v34 = vmul.f32 %v28, %v33
    %v36 = vrot.slane %v34, 1
    %v38 = vadd.f32 %v31, %v36
    %s39 = sld [smem:[#allocation2]]
    %v40 = vstv %s39
    %v41 = vadd.f32 %v38, %v40
    %v42 = vxor.u32 %v41, 2147483648
    %v43 = vmul.f32 %v42, 1.442695
    %v44 = vpow.pop %v43
    %v45 = vadd.f32 %v44, 1.0
    %v46 = vrcp.pop %v45
    %v47 = vmul.f32 %v45, %v46
    %v48 = vsub.f32 1.0, %v47
    %v49 = vmul.f32 %v46, %v48
    %v50 = vadd.f32 %v46, %v49
    %vm51 = vweird.f32 %v45
    %vm52 = vweird.f32 %v46
    %vm53 = vmor %vm51, %vm52
    %v54 = vsel %vm53, %v46, %v50
    %v55 = vand.u32 2147483647, %v45
    %vm56 = vcmp.eq.f32.partialorder %v55, 8.507059e+37
    %v57 = vand.u32 %v45, 2147483648
    %v58 = vor.u32 1.1754944e-38, %v57
    %v59 = vsel %vm56, %v58, %v54
    %v60 = vmul.f32 1.0, %v59
    %61 = vst [vmem:[%s3] sm:$0x1] %v60
    // Predicated region
    $region18: #{basic_model_forward.1} parent=1 // pred_check
      _
    $region19: #{basic_model_forward.1} parent=1 // pred_check_branch
      %63 = sbr.rel (0) target = $region21
    $region20: #{basic_model_forward.1} parent=1 // pred_region
      _
    $region21: #{basic_model_forward.1} parent=1 // pred_fallthru
      _
    // Predicated region
    $region22: #{basic_model_forward.1} parent=1 // pred_check
      _
    $region23: #{basic_model_forward.1} parent=1 // pred_check_branch
      %65 = sbr.rel (0) target = $region25
    $region24: #{basic_model_forward.1} parent=1 // pred_region
      _
    $region25: #{basic_model_forward.1} parent=1 // pred_fallthru
      _
    %66 = vsyncpa [#allocation4], 1

</llo_original>
